<compile_context>
chip_gen: v7x
topology: tpu7x:2x2x1
jax: 0.10.0
libtpu: 0.0.40
codegen_flags: <defaults>
</compile_context>

<pallas_src>
import jax
import jax.numpy as jnp
from jax.experimental import pallas as pl
from jax.experimental.pallas import tpu as pltpu


def _mlp_kernel(x_ref, w1_ref, b1_ref, w2_ref, b2_ref, o_ref):
    """One (NB, C, TILE) block of the PoolFormer Mlp.

    x_ref : (NB, C_in,  T)   w1_ref: (Hd, C_in)    b1_ref: (Hd, 1)
    o_ref : (NB, C_out, T)   w2_ref: (C_out, Hd)   b2_ref: (C_out, 1)
    """
    w1 = w1_ref[...]
    w2 = w2_ref[...]
    b1 = b1_ref[...].astype(jnp.float32)
    b2 = b2_ref[...].astype(jnp.float32)

    nb = x_ref.shape[0]
    for i in range(nb):  # static unroll over the (small) batch block
        # fc1: (Hd, C_in) @ (C_in, T) -> (Hd, T); native-dtype MXU op, f32 acc.
        x = x_ref[i].astype(w1.dtype)
        h = jnp.dot(w1, x, preferred_element_type=jnp.float32)
        h = h + b1  # lane-broadcast add (bias is constant over the spatial axis)

        # GELU (tanh approximation; transcendentals go to the EUP slot).
        h = jax.nn.gelu(h, approximate=True)

        # Dropout(p=0.0) == identity.

        # fc2: cast the activation DOWN to the weight dtype instead of
        # upcasting w2 to f32 -> keeps the bf16 MXU path when weights are bf16.
        y = jnp.dot(w2, h.astype(w2.dtype), preferred_element_type=jnp.float32)
        y = y + b2
        o_ref[i] = y.astype(o_ref.dtype)


def _pick_spatial_tile(hw128, tile_cap):
    """Largest multiple-of-128 divisor of hw128 that is <= tile_cap."""
    m = hw128 // 128
    cap = max(1, int(tile_cap) // 128)
    best = 1
    for d in range(1, m + 1):
        if m % d == 0 and d <= cap:
            best = d
    return 128 * best


def mlp_forward(x, w1, b1, w2, b2, *, tile_hw=1024, weight_buffers=None):
    """PoolFormer Mlp forward: 1x1 conv -> GELU -> 1x1 conv (dropout = identity).

    x : (N, C_in, H, W)  NCHW
    w1: (hidden, C_in)   b1: (hidden,)    (fc1: squeezed 1x1-conv weights)
    w2: (C_out, hidden)  b2: (C_out,)     (fc2)
    Returns (N, C_out, H, W) in x.dtype.

    tile_hw        : spatial (lane) tile cap. 1024-2048 is a good default on
                     v5e/v6e (128 MiB VMEM); cap ~512 on v7x (64 MiB) for the
                     large-C PoolFormer stages, together with bf16 weights.
    weight_buffers : optional pipeline buffer count for the grid-constant
                     weight/bias blocks (set 1 on v7x to halve their VMEM
                     footprint). Default None keeps Pallas' default buffering.
    """
    N, C_in, H, W = x.shape
    hidden = w1.shape[0]
    C_out = w2.shape[0]
    HW = H * W

    x2 = x.reshape(N, C_in, HW)

    # Pad the spatial axis only up to the next multiple of 128 (lane row).
    # When HW is already a multiple of 128 this path is completely zero-copy
    # (no pad, no output slice).
    hw128 = ((HW + 127) // 128) * 128
    if hw128 != HW:
        x2 = jnp.pad(x2, ((0, 0), (0, 0), (0, hw128 - HW)))
    HWk = hw128

    # Spatial tile: largest multiple-of-128 divisor of HWk under the cap
    # (divisor => no dead columns beyond the <128 pad above).
    tile = _pick_spatial_tile(HWk, tile_hw)
    hw_tiles = HWk // tile

    # Keep the grid >= 2 steps when possible so both v7x TensorCores get work
    # (free on single-TC v5e/v6e).
    m = HWk // 128
    if N * hw_tiles < 2 and m >= 2:
        ds = [d for d in range(1, m) if m % d == 0 and (m // d) >= 2]
        tile = 128 * max(ds)
        hw_tiles = HWk // tile

    # Batch blocking: amortize the ~0.35us per-grid-step overhead on small-HW
    # stages by moving several images per step (longer DMA bursts), without
    # collapsing the grid below 2 steps or blowing up the activation block.
    min_steps = 2 if N * hw_tiles >= 2 else 1
    nb = 1
    for d in range(1, N + 1):
        if N % d:
            continue
        if d * tile > 2048:                      # keep activation blocks modest
            continue
        if (N // d) * hw_tiles < min_steps:
            continue
        nb = d

    grid = (N // nb, hw_tiles)

    b1_2 = b1.reshape(hidden, 1)
    b2_2 = b2.reshape(C_out, 1)

    # Grid-constant weight/bias blocks; optionally single-buffered (v7x).
    w_kwargs = {}
    if weight_buffers is not None:
        w_kwargs = dict(pipeline_mode=pl.Buffered(int(weight_buffers)))

    in_specs = [
        pl.BlockSpec((nb, C_in, tile), lambda n, s: (n, 0, s)),
        pl.BlockSpec((hidden, C_in), lambda n, s: (0, 0), **w_kwargs),
        pl.BlockSpec((hidden, 1), lambda n, s: (0, 0), **w_kwargs),
        pl.BlockSpec((C_out, hidden), lambda n, s: (0, 0), **w_kwargs),
        pl.BlockSpec((C_out, 1), lambda n, s: (0, 0), **w_kwargs),
    ]
    out_specs = pl.BlockSpec((nb, C_out, tile), lambda n, s: (n, 0, s))

    # VMEM budget: double-buffered activation blocks + weight blocks + the f32
    # fc1 intermediate, with 2x headroom, clamped to a safe range.
    x_isz = jnp.dtype(x.dtype).itemsize
    w_isz = jnp.dtype(w1.dtype).itemsize
    w_bufs = 2 if weight_buffers is None else max(1, int(weight_buffers))
    est = (2 * nb * tile * (C_in + C_out) * x_isz
           + w_bufs * w_isz * (hidden * C_in + hidden + C_out * hidden + C_out)
           + 2 * hidden * tile * 4)
    vmem_limit = int(min(96 << 20, max(32 << 20, 2 * est)))

    out = pl.pallas_call(
        _mlp_kernel,
        out_shape=jax.ShapeDtypeStruct((N, C_out, HWk), x.dtype),
        grid_spec=pltpu.PrefetchScalarGridSpec(
            num_scalar_prefetch=0,
            grid=grid,
            in_specs=in_specs,
            out_specs=out_specs,
        ),
        compiler_params=pltpu.CompilerParams(
            # Both grid axes are independent -> shard across v7x TensorCores.
            dimension_semantics=("parallel", "parallel"),
            vmem_limit_bytes=vmem_limit,
        ),
    )(x2, w1, b1_2, w2, b2_2)

    if HWk != HW:
        out = out[:, :, :HW]
    return out.reshape(N, C_out, H, W)


def mlp_ref(x, w1, b1, w2, b2):
    """Pure-JAX reference (f32 math, same tanh-GELU as the kernel)."""
    N, C_in, H, W = x.shape
    xf = x.reshape(N, C_in, H * W).astype(jnp.float32)
    h = (jnp.einsum("oc,nct->not", w1.astype(jnp.float32), xf)
         + b1.astype(jnp.float32)[None, :, None])
    h = jax.nn.gelu(h, approximate=True)
    y = (jnp.einsum("oc,nct->not", w2.astype(jnp.float32), h)
         + b2.astype(jnp.float32)[None, :, None])
    return y.reshape(N, w2.shape[0], H, W).astype(x.dtype)


if __name__ == "__main__":
    key = jax.random.PRNGKey(0)
    kx, k1, k2, kb1, kb2 = jax.random.split(key, 5)

    # Shapes consistent with the module: batch=2, in=out=4 channels,
    # hidden=32, spatial 16x16.
    N, C_in, hidden, C_out, H, W = 2, 4, 32, 4, 16, 16
    x = jax.random.normal(kx, (N, C_in, H, W), dtype=jnp.float32)
    # Conv weights ~ trunc_normal(std=0.02) per init_weights (normal approx);
    # small bias perturbation so the bias path is exercised.
    w1 = 0.02 * jax.random.normal(k1, (hidden, C_in), dtype=jnp.float32)
    w2 = 0.02 * jax.random.normal(k2, (C_out, hidden), dtype=jnp.float32)
    b1 = 0.01 * jax.random.normal(kb1, (hidden,), dtype=jnp.float32)
    b2 = 0.01 * jax.random.normal(kb2, (C_out,), dtype=jnp.float32)

    # 1) f32, HW multiple of 128 -> fully zero-copy path.
    out = jax.block_until_ready(mlp_forward(x, w1, b1, w2, b2))
    ref = mlp_ref(x, w1, b1, w2, b2)
    assert out.shape == (N, C_out, H, W)
    err = float(jnp.max(jnp.abs(out - ref)))
    assert jnp.allclose(out, ref, atol=1e-5, rtol=1e-5), err

    # 2) bf16 weights/activations -> native bf16 MXU path (f32 accumulation).
    xb = x.astype(jnp.bfloat16)
    w1b, w2b = w1.astype(jnp.bfloat16), w2.astype(jnp.bfloat16)
    b1b, b2b = b1.astype(jnp.bfloat16), b2.astype(jnp.bfloat16)
    outb = jax.block_until_ready(mlp_forward(xb, w1b, b1b, w2b, b2b))
    refb = mlp_ref(xb, w1b, b1b, w2b, b2b).astype(jnp.float32)
    errb = float(jnp.max(jnp.abs(outb.astype(jnp.float32) - refb)))
    assert jnp.allclose(outb.astype(jnp.float32), refb, atol=5e-3, rtol=5e-2), errb

    # 3) Small ragged spatial size (HW=64 < 128) -> pad-to-128 path plus
    #    batch blocking (NB=2 images per grid step) with a >=2-step grid.
    N3, H3, W3 = 4, 8, 8
    x3 = jax.random.normal(kx, (N3, C_in, H3, W3), dtype=jnp.float32)
    out3 = jax.block_until_ready(mlp_forward(x3, w1, b1, w2, b2))
    ref3 = mlp_ref(x3, w1, b1, w2, b2)
    assert out3.shape == (N3, C_out, H3, W3)
    err3 = float(jnp.max(jnp.abs(out3 - ref3)))
    assert jnp.allclose(out3, ref3, atol=1e-5, rtol=1e-5), err3

    print("KERNEL_OK")
</pallas_src>

<mosaic_0001>
module attributes {stable_mosaic.version = 11 : i64} {
  func.func @_mlp_kernel(%arg0: i32, %arg1: i32, %arg2: memref<1x4x256xf32, #tpu.memory_space<vmem>>, %arg3: memref<32x4xf32, #tpu.memory_space<vmem>>, %arg4: memref<32x1xf32, #tpu.memory_space<vmem>>, %arg5: memref<4x32xf32, #tpu.memory_space<vmem>>, %arg6: memref<4x1xf32, #tpu.memory_space<vmem>>, %arg7: memref<1x4x256xf32, #tpu.memory_space<vmem>>) attributes {dimension_semantics = [#tpu.dimension_semantics<parallel>, #tpu.dimension_semantics<parallel>], iteration_bounds = array<i64: 2, 1>, scalar_prefetch = 0 : i64, scratch_operands = 0 : i64, tpu.core_type = #tpu.core_type<tc>, window_params = [{transform_indices = @transform_0, window_bounds = array<i64: 1, 4, 256>}, {pipeline_mode = #tpu.pipeline_mode<synchronous>, transform_indices = @transform_1, window_bounds = array<i64: 32, 4>}, {pipeline_mode = #tpu.pipeline_mode<synchronous>, transform_indices = @transform_2, window_bounds = array<i64: 32, 1>}, {pipeline_mode = #tpu.pipeline_mode<synchronous>, transform_indices = @transform_3, window_bounds = array<i64: 4, 32>}, {pipeline_mode = #tpu.pipeline_mode<synchronous>, transform_indices = @transform_4, window_bounds = array<i64: 4, 1>}, {transform_indices = @transform_5, window_bounds = array<i64: 1, 4, 256>}]} {
    %c0 = arith.constant 0 : index
    %c0_0 = arith.constant 0 : index
    %0 = vector.load %arg3[%c0, %c0_0] : memref<32x4xf32, #tpu.memory_space<vmem>>, vector<32x4xf32>
    %c0_1 = arith.constant 0 : index
    %c0_2 = arith.constant 0 : index
    %1 = vector.load %arg5[%c0_1, %c0_2] : memref<4x32xf32, #tpu.memory_space<vmem>>, vector<4x32xf32>
    %c0_3 = arith.constant 0 : index
    %c0_4 = arith.constant 0 : index
    %2 = vector.load %arg4[%c0_3, %c0_4] : memref<32x1xf32, #tpu.memory_space<vmem>>, vector<32x1xf32>
    %c0_5 = arith.constant 0 : index
    %c0_6 = arith.constant 0 : index
    %3 = vector.load %arg6[%c0_5, %c0_6] : memref<4x1xf32, #tpu.memory_space<vmem>>, vector<4x1xf32>
    %c0_7 = arith.constant 0 : index
    %c0_8 = arith.constant 0 : index
    %c0_9 = arith.constant 0 : index
    %4 = vector.load %arg2[%c0_7, %c0_8, %c0_9] : memref<1x4x256xf32, #tpu.memory_space<vmem>>, vector<1x4x256xf32>
    %5 = vector.shape_cast %4 : vector<1x4x256xf32> to vector<4x256xf32>
    %cst = arith.constant dense<0.000000e+00> : vector<32x256xf32>
    %6 = tpu.matmul %0, %5, %cst {dimension_numbers = #tpu.dot_dimension_numbers<[1], [0], [0], [1], [0, 0, 1, 1], [], []>} : vector<32x4xf32>, vector<4x256xf32>, vector<32x256xf32> -> vector<32x256xf32>
    %7 = vector.broadcast %2 : vector<32x1xf32> to vector<32x256xf32>
    %8 = arith.addf %6, %7 : vector<32x256xf32>
    %9 = arith.mulf %8, %8 : vector<32x256xf32>
    %10 = arith.mulf %8, %9 : vector<32x256xf32>
    %cst_10 = arith.constant 4.471500e-02 : f32
    %11 = vector.broadcast %cst_10 : f32 to vector<32x256xf32>
    %12 = arith.mulf %11, %10 : vector<32x256xf32>
    %13 = arith.addf %8, %12 : vector<32x256xf32>
    %cst_11 = arith.constant 0.797884583 : f32
    %14 = vector.broadcast %cst_11 : f32 to vector<32x256xf32>
    %15 = arith.mulf %14, %13 : vector<32x256xf32>
    %16 = math.tanh %15 : vector<32x256xf32>
    %cst_12 = arith.constant 1.000000e+00 : f32
    %17 = vector.broadcast %cst_12 : f32 to vector<32x256xf32>
    %18 = arith.addf %17, %16 : vector<32x256xf32>
    %cst_13 = arith.constant 5.000000e-01 : f32
    %19 = vector.broadcast %cst_13 : f32 to vector<32x256xf32>
    %20 = arith.mulf %19, %18 : vector<32x256xf32>
    %21 = arith.mulf %8, %20 : vector<32x256xf32>
    %cst_14 = arith.constant dense<0.000000e+00> : vector<4x256xf32>
    %22 = tpu.matmul %1, %21, %cst_14 {dimension_numbers = #tpu.dot_dimension_numbers<[1], [0], [0], [1], [0, 0, 1, 1], [], []>} : vector<4x32xf32>, vector<32x256xf32>, vector<4x256xf32> -> vector<4x256xf32>
    %23 = vector.broadcast %3 : vector<4x1xf32> to vector<4x256xf32>
    %24 = arith.addf %22, %23 : vector<4x256xf32>
    %c0_15 = arith.constant 0 : index
    %c0_16 = arith.constant 0 : index
    %c0_17 = arith.constant 0 : index
    %25 = vector.load %arg7[%c0_15, %c0_16, %c0_17] : memref<1x4x256xf32, #tpu.memory_space<vmem>>, vector<1x4x256xf32>
    %26 = vector.shape_cast %25 : vector<1x4x256xf32> to vector<4x256xf32>
    %27 = vector.shape_cast %24 : vector<4x256xf32> to vector<1x4x256xf32>
    tpu.vector_store %arg7[%c0_15, %c0_16, %c0_17], %27 {strides = array<i32>} : memref<1x4x256xf32, #tpu.memory_space<vmem>>, vector<1x4x256xf32>,
    return
  }
  func.func @transform_0(%arg0: i32, %arg1: i32) -> (i32, i32, i32) {
    %c0_i32 = arith.constant 0 : i32
    %c0_i32_0 = arith.constant 0 : i32
    return %arg0, %c0_i32, %arg1 : i32, i32, i32
  }
  func.func @transform_1(%arg0: i32, %arg1: i32) -> (i32, i32) {
    %c0_i32 = arith.constant 0 : i32
    %c0_i32_0 = arith.constant 0 : i32
    %c0_i32_1 = arith.constant 0 : i32
    return %c0_i32, %c0_i32_0 : i32, i32
  }
  func.func @transform_2(%arg0: i32, %arg1: i32) -> (i32, i32) {
    %c0_i32 = arith.constant 0 : i32
    %c0_i32_0 = arith.constant 0 : i32
    %c0_i32_1 = arith.constant 0 : i32
    return %c0_i32, %c0_i32_0 : i32, i32
  }
  func.func @transform_3(%arg0: i32, %arg1: i32) -> (i32, i32) {
    %c0_i32 = arith.constant 0 : i32
    %c0_i32_0 = arith.constant 0 : i32
    %c0_i32_1 = arith.constant 0 : i32
    return %c0_i32, %c0_i32_0 : i32, i32
  }
  func.func @transform_4(%arg0: i32, %arg1: i32) -> (i32, i32) {
    %c0_i32 = arith.constant 0 : i32
    %c0_i32_0 = arith.constant 0 : i32
    %c0_i32_1 = arith.constant 0 : i32
    return %c0_i32, %c0_i32_0 : i32, i32
  }
  func.func @transform_5(%arg0: i32, %arg1: i32) -> (i32, i32, i32) {
    %c0_i32 = arith.constant 0 : i32
    %c0_i32_0 = arith.constant 0 : i32
    return %arg0, %c0_i32, %arg1 : i32, i32, i32
  }
}

</mosaic_0001>

<llo_original>
// kernel: tpu_custom_call.1
$region0: #{tpu_custom_call.1}
  #allocation0 [shape = 'u32[]', space=smem, size = 0x4, offset = 0x4, fixed_abs, tag = 'smem constant byte address 0x4 - core index']
  #allocation1 [shape = 'u32[144,128]{1,0:T(1,128)}', space=vmem, size = 0x12000, scoped, tag = 'internal scratch']
  %s0 = inlined_call_operand.vmem [shape: f32[2,4,256], index: 0, kind: input, shape index: {}]
  %s1 = inlined_call_operand.vmem [shape: f32[32,4], index: 1, kind: input, shape index: {}]
  %s2 = inlined_call_operand.vmem [shape: f32[32,1], index: 2, kind: input, shape index: {}]
  %s3 = inlined_call_operand.vmem [shape: f32[4,32], index: 3, kind: input, shape index: {}]
  %s4 = inlined_call_operand.vmem [shape: f32[4,1], index: 4, kind: input, shape index: {}]
  %s5 = inlined_call_operand.hbm [shape: f32[2,4,256], index: 5, kind: output, shape index: {}]
  %s6 = sld [smem:[#allocation0]]
  $region53: #{tpu_custom_call.1} parent=0
    _
  %s8 = ssub.s32 1, %s6
  %s9 = scalar_select 0, %s8, %s6
  $region1: #{tpu_custom_call.1} parent=0
    #allocation2 [shape = 'u8[8192]{0}', space=vmem, size = 0x2000, scoped, tag = 'output window, operand 0']
    #allocation3 [shape = 's32[2]{0}', space=sflag, size = 0x8, scoped, tag = 'scoped memory for tpu_custom_call.1']
    %10 = vsyncpa [#allocation3], 0
    %s11 = scalar_lea.sflag [#allocation3], 1
    %12 = vsyncpa %s11, 0
    loop: start=0, step=1, limit=4
    $region2: #{tpu_custom_call.1} parent=1 // loop_pre_header
      _
    $region3: #{tpu_custom_call.1} parent=1 // loop_header
      %s14 = sphi 0, %s18
      %p15 = scmp.ge.s32.totalorder %s14, 4
      %s21 = sphi 0, %s33
      %s22 = sphi 0, %s29
      %s23 = sphi 0, %s21
      %s24 = sphi 0, %s22
      %s25 = sphi 0, %s23
      %s26 = sphi 0, %s24
      %s38 = sphi 0, %s40
      %s41 = sphi 0, %s38
      %s42 = sphi 0, %s41
      %s58 = sphi 0, %s42
      %s62 = sphi 0, %s62
      %s64 = sphi 0, %s62
      %s65 = sphi 0, %s64
      %s79 = sphi 0, %s65
      %s83 = sphi 0, %s83
      %s85 = sphi 0, %s83
      %s86 = sphi 0, %s85
      %s100 = sphi 0, %s86
      %s104 = sphi 0, %s104
      %s106 = sphi 0, %s104
      %s107 = sphi 0, %s106
      %s121 = sphi 0, %s107
      %s125 = sphi 0, %s125
      %s127 = sphi 0, %s125
      %s128 = sphi 0, %s127
      %s142 = sphi 0, %s128
      %s150 = sphi 0, %s152
      %s153 = sphi 0, %s150
      %s154 = sphi 0, %s153
      %s170 = sphi 0, %s154
    $region4: #{tpu_custom_call.1} parent=1 // loop_header_branch
      %17 = sbr.rel (%p15) target = $region8
    $region5: #{tpu_custom_call.1} parent=1 // loop_body
      %s19 = ssub.s32 %s14, 1
      %s20 = ssub.s32 %s14, 2
      %s27 = sadd.s32 1, %s22
      %p28 = scmp.ge.s32.totalorder %s27, 1
      %s29 = scalar_select %p28, 0, %s27
      %s30 = sadd.s32 1, %s21
      %s31 = scalar_select %p28, %s30, %s21
      %p32 = scmp.ge.s32.totalorder %s31, 2
      %s33 = scalar_select %p32, 0, %s31
      %s34 = ssub.s32 %s21, %s33
      %s35 = ssub.s32 %s22, %s29
      %s36 = sor.u32 %s34, %s35
      %p37 = scmp.eq.s32.totalorder %s36, 0
      %s39 = sadd.s32 %s38, 1
      %s40 = scalar_select %p37, %s38, %s39
      %p43 = pneg %p37
      %p44 = scmp.eq.s32.totalorder %s14, 1
      %p45 = por %p43, %p44
      %p46 = scmp.ne.s32.totalorder %s38, %s41
      %p47 = scmp.eq.s32.totalorder %s14, 0
      %p48 = por %p46, %p47
      %p49 = scmp.ne.s32.totalorder %s38, %s41
      %p50 = scmp.eq.s32.totalorder %s19, 1
      %p51 = por %p49, %p50
      %p52 = scmp.ne.s32.totalorder %s41, %s42
      %p53 = scmp.eq.s32.totalorder %s19, 0
      %p54 = por %p52, %p53
      %p55 = scmp.ne.s32.totalorder %s41, %s42
      %p56 = scmp.eq.s32.totalorder %s20, 1
      %p57 = por %p55, %p56
      %p59 = scmp.ne.s32.totalorder %s42, %s58
      %p60 = scmp.eq.s32.totalorder %s20, 0
      %p61 = por %p59, %p60
      %s63 = sadd.s32 %s62, 1
      %p66 = scmp.eq.s32.totalorder %s14, 1
      %p67 = scmp.ne.s32.totalorder %s62, %s64
      %p68 = scmp.eq.s32.totalorder %s14, 0
      %p69 = por %p67, %p68
      %p70 = scmp.ne.s32.totalorder %s62, %s64
      %p71 = scmp.eq.s32.totalorder %s19, 1
      %p72 = por %p70, %p71
      %p73 = scmp.ne.s32.totalorder %s64, %s65
      %p74 = scmp.eq.s32.totalorder %s19, 0
      %p75 = por %p73, %p74
      %p76 = scmp.ne.s32.totalorder %s64, %s65
      %p77 = scmp.eq.s32.totalorder %s20, 1
      %p78 = por %p76, %p77
      %p80 = scmp.ne.s32.totalorder %s65, %s79
      %p81 = scmp.eq.s32.totalorder %s20, 0
      %p82 = por %p80, %p81
      %s84 = sadd.s32 %s83, 1
      %p87 = scmp.eq.s32.totalorder %s14, 1
      %p88 = scmp.ne.s32.totalorder %s83, %s85
      %p89 = scmp.eq.s32.totalorder %s14, 0
      %p90 = por %p88, %p89
      %p91 = scmp.ne.s32.totalorder %s83, %s85
      %p92 = scmp.eq.s32.totalorder %s19, 1
      %p93 = por %p91, %p92
      %p94 = scmp.ne.s32.totalorder %s85, %s86
      %p95 = scmp.eq.s32.totalorder %s19, 0
      %p96 = por %p94, %p95
      %p97 = scmp.ne.s32.totalorder %s85, %s86
      %p98 = scmp.eq.s32.totalorder %s20, 1
      %p99 = por %p97, %p98
      %p101 = scmp.ne.s32.totalorder %s86, %s100
      %p102 = scmp.eq.s32.totalorder %s20, 0
      %p103 = por %p101, %p102
      %s105 = sadd.s32 %s104, 1
      %p108 = scmp.eq.s32.totalorder %s14, 1
      %p109 = scmp.ne.s32.totalorder %s104, %s106
      %p110 = scmp.eq.s32.totalorder %s14, 0
      %p111 = por %p109, %p110
      %p112 = scmp.ne.s32.totalorder %s104, %s106
      %p113 = scmp.eq.s32.totalorder %s19, 1
      %p114 = por %p112, %p113
      %p115 = scmp.ne.s32.totalorder %s106, %s107
      %p116 = scmp.eq.s32.totalorder %s19, 0
      %p117 = por %p115, %p116
      %p118 = scmp.ne.s32.totalorder %s106, %s107
      %p119 = scmp.eq.s32.totalorder %s20, 1
      %p120 = por %p118, %p119
      %p122 = scmp.ne.s32.totalorder %s107, %s121
      %p123 = scmp.eq.s32.totalorder %s20, 0
      %p124 = por %p122, %p123
      %s126 = sadd.s32 %s125, 1
      %p129 = scmp.eq.s32.totalorder %s14, 1
      %p130 = scmp.ne.s32.totalorder %s125, %s127
      %p131 = scmp.eq.s32.totalorder %s14, 0
      %p132 = por %p130, %p131
      %p133 = scmp.ne.s32.totalorder %s125, %s127
      %p134 = scmp.eq.s32.totalorder %s19, 1
      %p135 = por %p133, %p134
      %p136 = scmp.ne.s32.totalorder %s127, %s128
      %p137 = scmp.eq.s32.totalorder %s19, 0
      %p138 = por %p136, %p137
      %p139 = scmp.ne.s32.totalorder %s127, %s128
      %p140 = scmp.eq.s32.totalorder %s20, 1
      %p141 = por %p139, %p140
      %p143 = scmp.ne.s32.totalorder %s128, %s142
      %p144 = scmp.eq.s32.totalorder %s20, 0
      %p145 = por %p143, %p144
      %s146 = ssub.s32 %s21, %s33
      %s147 = ssub.s32 %s22, %s29
      %s148 = sor.u32 %s146, %s147
      %p149 = scmp.eq.s32.totalorder %s148, 0
      %s151 = sadd.s32 %s150, 1
      %s152 = scalar_select %p149, %s150, %s151
      %p155 = pneg %p149
      %p156 = scmp.eq.s32.totalorder %s14, 1
      %p157 = por %p155, %p156
      %p158 = scmp.ne.s32.totalorder %s150, %s153
      %p159 = scmp.eq.s32.totalorder %s14, 0
      %p160 = por %p158, %p159
      %p161 = scmp.ne.s32.totalorder %s150, %s153
      %p162 = scmp.eq.s32.totalorder %s19, 1
      %p163 = por %p161, %p162
      %p164 = scmp.ne.s32.totalorder %s153, %s154
      %p165 = scmp.eq.s32.totalorder %s19, 0
      %p166 = por %p164, %p165
      %p167 = scmp.ne.s32.totalorder %s153, %s154
      %p168 = scmp.eq.s32.totalorder %s20, 1
      %p169 = por %p167, %p168
      %p171 = scmp.ne.s32.totalorder %s154, %s170
      %p172 = scmp.eq.s32.totalorder %s20, 0
      %p173 = por %p171, %p172
      %p174 = scmp.le.s32.totalorder 1, %s14
      %p175 = scmp.lt.s32.totalorder %s14, 3
      %p176 = pnand %p174, %p175
      %p177 = pneg %p176
      // Predicated region
      $region9: #{tpu_custom_call.1} parent=5 // pred_check
        _
      $region10: #{tpu_custom_call.1} parent=5 // pred_check_branch
        %179 = sbr.rel (%p176) target = $region12
      $region11: #{tpu_custom_call.1} parent=5 // pred_region
        %s180 = ssub.s32 %s14, 1
        // Predicated region
        $region13: #{tpu_custom_call.1} parent=11 // pred_check
          %p181 = pneg %p75
        $region14: #{tpu_custom_call.1} parent=11 // pred_check_branch
          %183 = sbr.rel (%p181) target = $region16
        $region15: #{tpu_custom_call.1} parent=11 // pred_region
          _
        $region16: #{tpu_custom_call.1} parent=11 // pred_fallthru
          _
        // Predicated region
        $region17: #{tpu_custom_call.1} parent=11 // pred_check
          %p184 = pneg %p96
        $region18: #{tpu_custom_call.1} parent=11 // pred_check_branch
          %186 = sbr.rel (%p184) target = $region20
        $region19: #{tpu_custom_call.1} parent=11 // pred_region
          _
        $region20: #{tpu_custom_call.1} parent=11 // pred_fallthru
          _
        // Predicated region
        $region21: #{tpu_custom_call.1} parent=11 // pred_check
          %p187 = pneg %p117
        $region22: #{tpu_custom_call.1} parent=11 // pred_check_branch
          %189 = sbr.rel (%p187) target = $region24
        $region23: #{tpu_custom_call.1} parent=11 // pred_region
          _
        $region24: #{tpu_custom_call.1} parent=11 // pred_fallthru
          _
        // Predicated region
        $region25: #{tpu_custom_call.1} parent=11 // pred_check
          %p190 = pneg %p138
        $region26: #{tpu_custom_call.1} parent=11 // pred_check_branch
          %192 = sbr.rel (%p190) target = $region28
        $region27: #{tpu_custom_call.1} parent=11 // pred_region
          _
        $region28: #{tpu_custom_call.1} parent=11 // pred_fallthru
          _
      $region12: #{tpu_custom_call.1} parent=5 // pred_fallthru
        _
      %p193 = scmp.lt.s32.totalorder %s14, 2
      // Predicated region
      $region29: #{tpu_custom_call.1} parent=5 // pred_check
        %p194 = pneg %p193
      $region30: #{tpu_custom_call.1} parent=5 // pred_check_branch
        %196 = sbr.rel (%p194) target = $region32
      $region31: #{tpu_custom_call.1} parent=5 // pred_region
        // Predicated region
        $region33: #{tpu_custom_call.1} parent=31 // pred_check
          %p197 = pneg %p48
        $region34: #{tpu_custom_call.1} parent=31 // pred_check_branch
          %199 = sbr.rel (%p197) target = $region36
        $region35: #{tpu_custom_call.1} parent=31 // pred_region
          %s200 = smul.u32 2, %s22
          %p201 = scmp.lt.s32.totalorder %s21, 1
          %s202 = scalar_select %p201, %s21, 1
          %p203 = scmp.lt.s32.totalorder %s200, 1
          %s204 = scalar_select %p203, %s200, 1
          %s205 = smul.addr %s202, 2
          %s206 = sadd.s32 %s204, %s205
          %s207 = smul.addr %s206, 4
          %s208 = scalar_lea.vmem %s0, %s207
          %s209 = smul.u32 2, %s22
        $region36: #{tpu_custom_call.1} parent=31 // pred_fallthru
          _
      $region32: #{tpu_custom_call.1} parent=5 // pred_fallthru
        _
      %p210 = scmp.le.s32.totalorder 1, %s14
      %p211 = scmp.lt.s32.totalorder %s14, 3
      %p212 = pnand %p210, %p211
      %p213 = pneg %p212
      // Predicated region
      $region37: #{tpu_custom_call.1} parent=5 // pred_check
        _
      $region38: #{tpu_custom_call.1} parent=5 // pred_check_branch
        %215 = sbr.rel (%p212) target = $region40
      $region39: #{tpu_custom_call.1} parent=5 // pred_region
        %s216 = ssub.s32 %s14, 1
        %s217 = smul.u32 2, %s24
        %p218 = scmp.lt.s32.totalorder %s23, 1
        %s219 = scalar_select %p218, %s23, 1
        %p220 = scmp.lt.s32.totalorder %s217, 1
        %s221 = scalar_select %p220, %s217, 1
        %s222 = smul.addr %s219, 2
        %s223 = sadd.s32 %s221, %s222
        %s224 = smul.addr %s223, 4
        %s225 = scalar_lea.vmem %s0, %s224
        %p226 = pneg %p54
        %p227 = pneg %p51
        %p228 = pneg %p75
        %p229 = pneg %p72
        %p230 = pneg %p96
        %p231 = pneg %p93
        %p232 = pneg %p117
        %p233 = pneg %p114
        %p234 = pneg %p138
        %p235 = pneg %p135
        %p236 = pneg %p166
        %p237 = pneg %p163
        %s238 = sand.u32 %s153, 1
        %s239 = scalar_lea.sflag [#allocation3], %s238
        %s240 = sand.u32 %s153, 1
        %s241 = smul.addr %s240, 8
        %s242 = scalar_lea.vmem [#allocation2], %s241
        %s243 = smul.u32 2, %s24
        %p244 = scmp.lt.s32.totalorder %s23, 1
        %s245 = scalar_select %p244, %s23, 1
        %p246 = scmp.lt.s32.totalorder %s243, 1
        %s247 = scalar_select %p246, %s243, 1
        %s248 = smul.addr %s245, 2
        %s249 = sadd.s32 %s247, %s248
        %s250 = smul.addr %s249, 4
        %s251 = scalar_lea.vmem %s0, %s250
        %s252 = smul.u32 2, %s24
        %s253 = smul.u32 2, %s24
        %v254 = vld [vmem:[%s1] sm:$0xff]
        %v255 = vld [vmem:[%s1 + $0x8] sm:$0xff]
        %v256 = vld [vmem:[%s1 + $0x10] sm:$0xff]
        %v257 = vld [vmem:[%s1 + $0x18] sm:$0xff]
        %v258 = vld [vmem:[%s3] sm:$0xf]
        %v259 = vld [vmem:[%s2] sm:$0xff]
        %v260 = vld [vmem:[%s2 + $0x8] sm:$0xff]
        %v261 = vld [vmem:[%s2 + $0x10] sm:$0xff]
        %v262 = vld [vmem:[%s2 + $0x18] sm:$0xff]
        %v263 = vld [vmem:[%s4] sm:$0xf]
        %v264 = vld [vmem:[%s251] sm:$0xff]
        %266 = vset.pattern.permute.xlu0 0
        %267 = vperm.xlu0 %266, %v259
        %v268 = vpop.permute.xlu0 %267
        %271 = vset.pattern.permute.xlu0 0
        %272 = vperm.xlu0 %271, %v260
        %v273 = vpop.permute.xlu0 %272
        %276 = vset.pattern.permute.xlu0 0
        %277 = vperm.xlu0 %276, %v261
        %v278 = vpop.permute.xlu0 %277
        %281 = vset.pattern.permute.xlu0 0
        %282 = vperm.xlu0 %281, %v262
        %v283 = vpop.permute.xlu0 %282
        %v286 = vcombine.high %v264, %v264
        %vm287 = vcmask 31744
        %v289 = vsel %vm287, %v254, 0
        %v292 = vsel %vm287, %v255, 0
        %v295 = vsel %vm287, %v256, 0
        %v298 = vsel %vm287, %v257, 0
        %vm300 = vcmask 1043456
        %v301 = vsel %vm300, %v264, 0
        %v303 = vsel %vm300, %v286, 0
        %305 = vmatprep.subr.mxu0 %v303
        %306 = vmatpush1.msra.mxu0 %v301
        %307 = vmatprep.subr.mxu0 0.0
        %308 = vmatpush1.msra.mxu0 0.0
        %309 = vmatprep.subr.mxu0 0.0
        %310 = vmatpush1.msra.mxu0 0.0
        %311 = vmatprep.subr.mxu0 0.0
        %312 = vmatpush1.msra.mxu0 0.0
        %313 = vmatprep.subr.mxu0 0.0
        %314 = vmatpush1.msra.mxu0 0.0
        %315 = vmatprep.subr.mxu0 0.0
        %316 = vmatpush1.msra.mxu0 0.0
        %317 = vmatprep.subr.mxu0 0.0
        %318 = vmatpush1.msra.mxu0 0.0
        %319 = vmatprep.subr.mxu0 0.0
        %320 = vmatpush1.msra.mxu0 0.0
        %321 = vmatprep.subr.mxu0 0.0
        %322 = vmatpush1.msra.mxu0 0.0
        %323 = vmatprep.subr.mxu0 0.0
        %324 = vmatpush1.msra.mxu0 0.0
        %325 = vmatprep.subr.mxu0 0.0
        %326 = vmatpush1.msra.mxu0 0.0
        %327 = vmatprep.subr.mxu0 0.0
        %328 = vmatpush1.msra.mxu0 0.0
        %329 = vmatprep.subr.mxu0 0.0
        %330 = vmatpush1.msra.mxu0 0.0
        %331 = vmatprep.subr.mxu0 0.0
        %332 = vmatpush1.msra.mxu0 0.0
        %333 = vmatprep.subr.mxu0 0.0
        %334 = vmatpush1.msra.mxu0 0.0
        %335 = vmatprep.subr.mxu0 0.0
        %336 = vmatpush1.msra.mxu0 0.0
        %337 = vmatprep.subr.mxu0 0.0
        %338 = vmatpush1.msra.mxu0 0.0
        %339 = vmatprep.subr.mxu0 0.0
        %340 = vmatpush1.msra.mxu0 0.0
        %341 = vmatprep.subr.mxu0 0.0
        %342 = vmatpush1.msra.mxu0 0.0
        %343 = vmatprep.subr.mxu0 0.0
        %344 = vmatpush1.msra.mxu0 0.0
        %345 = vmatprep.subr.mxu0 0.0
        %346 = vmatpush1.msra.mxu0 0.0
        %347 = vmatprep.subr.mxu0 0.0
        %348 = vmatpush1.msra.mxu0 0.0
        %349 = vmatprep.subr.mxu0 0.0
        %350 = vmatpush1.msra.mxu0 0.0
        %351 = vmatprep.subr.mxu0 0.0
        %352 = vmatpush1.msra.mxu0 0.0
        %353 = vmatprep.subr.mxu0 0.0
        %354 = vmatpush1.msra.mxu0 0.0
        %355 = vmatprep.subr.mxu0 0.0
        %356 = vmatpush1.msra.mxu0 0.0
        %357 = vmatprep.subr.mxu0 0.0
        %358 = vmatpush1.msra.mxu0 0.0
        %359 = vmatprep.subr.mxu0 0.0
        %360 = vmatpush1.msra.mxu0 0.0
        %361 = vmatprep.subr.mxu0 0.0
        %362 = vmatpush1.msra.mxu0 0.0
        %363 = vmatprep.subr.mxu0 0.0
        %364 = vmatpush1.msra.mxu0 0.0
        %365 = vmatprep.subr.mxu0 0.0
        %366 = vmatpush1.msra.mxu0 0.0
        %367 = vmatprep.subr.mxu0 0.0
        %368 = vmatpush1.msra.mxu0 0.0
        %369 = vmatprep.mubr.f32.mxu0 0.0
        %370 = vmatmul.mubr.f32.gmra.mrb[0].mxu0 %v289
        %v371 = vpop.f32.mrb[0].mxu0
        %v372 = vadd.f32 %v268, %v371
        %v373 = vpop.f32.mrb[0].mxu0
        %v374 = vadd.f32 %v268, %v373
        %375 = vmatprep.mubr.f32.mxu0 0.0
        %376 = vmatmul.mubr.f32.gmra.mrb[0].mxu0 %v292
        %v377 = vpop.f32.mrb[0].mxu0
        %v378 = vadd.f32 %v273, %v377
        %v379 = vpop.f32.mrb[0].mxu0
        %v380 = vadd.f32 %v273, %v379
        %381 = vmatprep.mubr.f32.mxu0 0.0
        %382 = vmatmul.mubr.f32.gmra.mrb[0].mxu0 %v295
        %v383 = vpop.f32.mrb[0].mxu0
        %v384 = vadd.f32 %v278, %v383
        %v385 = vpop.f32.mrb[0].mxu0
        %v386 = vadd.f32 %v278, %v385
        %387 = vmatprep.mubr.f32.mxu0 0.0
        %388 = vmatmul.mubr.f32.gmra.mrb[0].mxu0 %v298
        %v389 = vpop.f32.mrb[0].mxu0
        %v390 = vadd.f32 %v283, %v389
        %v391 = vpop.f32.mrb[0].mxu0
        %v392 = vadd.f32 %v283, %v391
        %393 = vdwg.mxu0
        %v394 = vmul.f32 %v372, %v372
        %v395 = vmul.f32 %v374, %v374
        %v396 = vmul.f32 %v378, %v378
        %v397 = vmul.f32 %v380, %v380
        %v398 = vmul.f32 %v384, %v384
        %v399 = vmul.f32 %v386, %v386
        %v400 = vmul.f32 %v390, %v390
        %v401 = vmul.f32 %v392, %v392
        %v402 = vmul.f32 %v372, %v394
        %v403 = vmul.f32 %v374, %v395
        %v404 = vmul.f32 %v378, %v396
        %v405 = vmul.f32 %v380, %v397
        %v406 = vmul.f32 %v384, %v398
        %v407 = vmul.f32 %v386, %v399
        %v408 = vmul.f32 %v390, %v400
        %v409 = vmul.f32 %v392, %v401
        %v410 = vmul.f32 %v402, 0.044715
        %v411 = vmul.f32 %v403, 0.044715
        %v412 = vmul.f32 %v404, 0.044715
        %v413 = vmul.f32 %v405, 0.044715
        %v414 = vmul.f32 %v406, 0.044715
        %v415 = vmul.f32 %v407, 0.044715
        %v416 = vmul.f32 %v408, 0.044715
        %v417 = vmul.f32 %v409, 0.044715
        %v418 = vadd.f32 %v372, %v410
        %v419 = vadd.f32 %v374, %v411
        %v420 = vadd.f32 %v378, %v412
        %v421 = vadd.f32 %v380, %v413
        %v422 = vadd.f32 %v384, %v414
        %v423 = vadd.f32 %v386, %v415
        %v424 = vadd.f32 %v390, %v416
        %v425 = vadd.f32 %v392, %v417
        %v426 = vmul.f32 %v418, 0.7978846
        %v427 = vmul.f32 %v419, 0.7978846
        %v428 = vmul.f32 %v420, 0.7978846
        %v429 = vmul.f32 %v421, 0.7978846
        %v430 = vmul.f32 %v422, 0.7978846
        %v431 = vmul.f32 %v423, 0.7978846
        %v432 = vmul.f32 %v424, 0.7978846
        %v433 = vmul.f32 %v425, 0.7978846
        %v434 = vtanh.pop %v426
        %v435 = vtanh.pop %v427
        %v436 = vtanh.pop %v428
        %v437 = vtanh.pop %v429
        %v438 = vtanh.pop %v430
        %v439 = vtanh.pop %v431
        %v440 = vtanh.pop %v432
        %v441 = vtanh.pop %v433
        %v442 = vadd.f32 %v434, 1.0
        %v443 = vadd.f32 %v435, 1.0
        %v444 = vadd.f32 %v436, 1.0
        %v445 = vadd.f32 %v437, 1.0
        %v446 = vadd.f32 %v438, 1.0
        %v447 = vadd.f32 %v439, 1.0
        %v448 = vadd.f32 %v440, 1.0
        %v449 = vadd.f32 %v441, 1.0
        %v450 = vmul.f32 %v442, 0.5
        %v451 = vmul.f32 %v443, 0.5
        %v452 = vmul.f32 %v444, 0.5
        %v453 = vmul.f32 %v445, 0.5
        %v454 = vmul.f32 %v446, 0.5
        %v455 = vmul.f32 %v447, 0.5
        %v456 = vmul.f32 %v448, 0.5
        %v457 = vmul.f32 %v449, 0.5
        %v458 = vmul.f32 %v372, %v450
        %v459 = vmul.f32 %v374, %v451
        %v460 = vmul.f32 %v378, %v452
        %v461 = vmul.f32 %v380, %v453
        %v462 = vmul.f32 %v384, %v454
        %v463 = vmul.f32 %v386, %v455
        %v464 = vmul.f32 %v390, %v456
        %v465 = vmul.f32 %v392, %v457
        %467 = vset.pattern.permute.xlu0 0
        %468 = vperm.xlu0 %467, %v263
        %v469 = vpop.permute.xlu0 %468
        %vm471 = vcmask 261120
        %v473 = vsel %vm471, %v258, 0
        %475 = vmatprep.subr.mxu0 %v459
        %476 = vmatpush1.msra.mxu0 %v458
        %477 = vmatprep.subr.mxu0 %v461
        %478 = vmatpush1.msra.mxu0 %v460
        %479 = vmatprep.subr.mxu0 %v463
        %480 = vmatpush1.msra.mxu0 %v462
        %481 = vmatprep.subr.mxu0 %v465
        %482 = vmatpush1.msra.mxu0 %v464
        %483 = vmatprep.subr.mxu0 0.0
        %484 = vmatpush1.msra.mxu0 0.0
        %485 = vmatprep.subr.mxu0 0.0
        %486 = vmatpush1.msra.mxu0 0.0
        %487 = vmatprep.subr.mxu0 0.0
        %488 = vmatpush1.msra.mxu0 0.0
        %489 = vmatprep.subr.mxu0 0.0
        %490 = vmatpush1.msra.mxu0 0.0
        %491 = vmatprep.subr.mxu0 0.0
        %492 = vmatpush1.msra.mxu0 0.0
        %493 = vmatprep.subr.mxu0 0.0
        %494 = vmatpush1.msra.mxu0 0.0
        %495 = vmatprep.subr.mxu0 0.0
        %496 = vmatpush1.msra.mxu0 0.0
        %497 = vmatprep.subr.mxu0 0.0
        %498 = vmatpush1.msra.mxu0 0.0
        %499 = vmatprep.subr.mxu0 0.0
        %500 = vmatpush1.msra.mxu0 0.0
        %501 = vmatprep.subr.mxu0 0.0
        %502 = vmatpush1.msra.mxu0 0.0
        %503 = vmatprep.subr.mxu0 0.0
        %504 = vmatpush1.msra.mxu0 0.0
        %505 = vmatprep.subr.mxu0 0.0
        %506 = vmatpush1.msra.mxu0 0.0
        %507 = vmatprep.subr.mxu0 0.0
        %508 = vmatpush1.msra.mxu0 0.0
        %509 = vmatprep.subr.mxu0 0.0
        %510 = vmatpush1.msra.mxu0 0.0
        %511 = vmatprep.subr.mxu0 0.0
        %512 = vmatpush1.msra.mxu0 0.0
        %513 = vmatprep.subr.mxu0 0.0
        %514 = vmatpush1.msra.mxu0 0.0
        %515 = vmatprep.subr.mxu0 0.0
        %516 = vmatpush1.msra.mxu0 0.0
        %517 = vmatprep.subr.mxu0 0.0
        %518 = vmatpush1.msra.mxu0 0.0
        %519 = vmatprep.subr.mxu0 0.0
        %520 = vmatpush1.msra.mxu0 0.0
        %521 = vmatprep.subr.mxu0 0.0
        %522 = vmatpush1.msra.mxu0 0.0
        %523 = vmatprep.subr.mxu0 0.0
        %524 = vmatpush1.msra.mxu0 0.0
        %525 = vmatprep.subr.mxu0 0.0
        %526 = vmatpush1.msra.mxu0 0.0
        %527 = vmatprep.subr.mxu0 0.0
        %528 = vmatpush1.msra.mxu0 0.0
        %529 = vmatprep.subr.mxu0 0.0
        %530 = vmatpush1.msra.mxu0 0.0
        %531 = vmatprep.subr.mxu0 0.0
        %532 = vmatpush1.msra.mxu0 0.0
        %533 = vmatprep.subr.mxu0 0.0
        %534 = vmatpush1.msra.mxu0 0.0
        %535 = vmatprep.subr.mxu0 0.0
        %536 = vmatpush1.msra.mxu0 0.0
        %537 = vmatprep.subr.mxu0 0.0
        %538 = vmatpush1.msra.mxu0 0.0
        %539 = vmatprep.mubr.f32.mxu0 0.0
        %540 = vmatmul.mubr.f32.gmra.mrb[0].mxu0 %v473
        %v541 = vpop.f32.mrb[0].mxu0
        %v542 = vadd.f32 %v469, %v541
        %v543 = vpop.f32.mrb[0].mxu0
        %v544 = vadd.f32 %v469, %v543
        %545 = vdwg.mxu0
        %v548 = vcombine.low %v542, %v544
        %550 = vst [vmem:[%s242] sm:$0xff] %v548
        %s551 = sand.u32 %s153, 1
        %s552 = scalar_lea.sflag [#allocation3], %s551
        %s553 = sand.u32 %s153, 1
        %s554 = smul.addr %s553, 8
        %s555 = scalar_lea.vmem [#allocation2], %s554
        // Predicated region
        $region41: #{tpu_custom_call.1} parent=39 // pred_check
          %p556 = pneg %p163
        $region42: #{tpu_custom_call.1} parent=39 // pred_check_branch
          %558 = sbr.rel (%p556) target = $region44
        $region43: #{tpu_custom_call.1} parent=39 // pred_region
          %s559 = smul.u32 2, %s24
          %s561 = ssub.s32 128, 128
          %562 = vsyncadd %s552, %s561
          %s563 = smul.addr %s23, 2
          %s564 = sadd.s32 %s559, %s563
          %s565 = smul.addr %s564, 64
          %s566 = scalar_lea.hbm %s5, %s565
          %s568 = sshll.u32 %s555, 4
          %s569 = int_to_ptr.vmem [resolvable:$true] %s568
          %571 = dma.vmem_to_hbm [thread:$0]  %s569, 128, %s566, %s552
        $region44: #{tpu_custom_call.1} parent=39 // pred_fallthru
          _
      $region40: #{tpu_custom_call.1} parent=5 // pred_fallthru
        _
      %p572 = scmp.le.s32.totalorder 2, %s14
      // Predicated region
      $region45: #{tpu_custom_call.1} parent=5 // pred_check
        %p573 = pneg %p572
      $region46: #{tpu_custom_call.1} parent=5 // pred_check_branch
        %575 = sbr.rel (%p573) target = $region48
      $region47: #{tpu_custom_call.1} parent=5 // pred_region
        %s576 = ssub.s32 %s14, 2
        // Predicated region
        $region49: #{tpu_custom_call.1} parent=47 // pred_check
          %p577 = pneg %p169
        $region50: #{tpu_custom_call.1} parent=47 // pred_check_branch
          %579 = sbr.rel (%p577) target = $region52
        $region51: #{tpu_custom_call.1} parent=47 // pred_region
          %s580 = sand.u32 %s154, 1
          %s581 = scalar_lea.sflag [#allocation3], %s580
          %s582 = sand.u32 %s154, 1
          %s583 = smul.addr %s582, 8
          %s584 = scalar_lea.vmem [#allocation2], %s583
          %585 = dma.done %s581, 128
        $region52: #{tpu_custom_call.1} parent=47 // pred_fallthru
          _
      $region48: #{tpu_custom_call.1} parent=5 // pred_fallthru
        _
    $region6: #{tpu_custom_call.1} parent=1 // loop_footer
      %s18 = sadd.s32 1, %s14
    $region7: #{tpu_custom_call.1} parent=1 // loop_footer_branch
      %13 = sbr.rel target = $region3
    $region8: #{tpu_custom_call.1} parent=1 // loop_exit
      _
    %586 = vsyncpa [#allocation3], 1
    %s587 = scalar_lea.sflag [#allocation3], 1
    %588 = vsyncpa %s587, 1

</llo_original>
